<compile_context>
chip_gen: v7x
topology: tpu7x:2x2x1
jax: 0.10.0
libtpu: 0.0.40
codegen_flags: <defaults>
</compile_context>

<pallas_src>
import jax
import jax.numpy as jnp
from jax.experimental import pallas as pl
from jax.experimental.pallas import tpu as pltpu


def _conv1x1_kernel(w_ref, x_ref, o_ref):
    # w_ref: (Cout, Cin)      resident weight block (same for every grid step)
    # x_ref: (1, Cin, t_hw)   one batch element, one spatial tile
    # o_ref: (1, Cout, t_hw)
    o_ref[0] = jnp.dot(
        w_ref[...], x_ref[0], preferred_element_type=jnp.float32
    ).astype(o_ref.dtype)


def conv2d_1x1(x_nchw: jax.Array, weight_oihw: jax.Array, *, spatial_tile: int = 512) -> jax.Array:
    """1x1 stride-1 conv, bias=False.  x: [N, Cin, H, W], weight: [Cout, Cin, 1, 1]."""
    N, Cin, H, W = x_nchw.shape
    Cout = weight_oihw.shape[0]
    assert weight_oihw.shape == (Cout, Cin, 1, 1)
    HW = H * W

    # Contiguity-preserving reshapes only -- no transposes in the wrapper.
    w_mat = weight_oihw.reshape(Cout, Cin)      # (Cout, Cin)
    x_mat = x_nchw.reshape(N, Cin, HW)          # (N, Cin, H*W)

    # Single spatial block when the problem comfortably fits VMEM (this
    # module: HW=196 -> grid step count 1).  Otherwise tile HW in 128-aligned
    # chunks (keeps blocks within v7x VMEM and shards across megacore).
    if HW <= spatial_tile:
        t_hw, n_s = HW, 1
    else:
        t_hw, n_s = spatial_tile, pl.cdiv(HW, spatial_tile)

    grid = (N, n_s)
    itemsize = jnp.dtype(x_nchw.dtype).itemsize
    cost = pl.CostEstimate(
        flops=2 * N * HW * Cin * Cout,
        transcendentals=0,
        bytes_accessed=(N * Cin * HW + Cout * Cin + N * Cout * HW) * itemsize,
    )

    out = pl.pallas_call(
        _conv1x1_kernel,
        out_shape=jax.ShapeDtypeStruct((N, Cout, HW), x_nchw.dtype),
        grid_spec=pltpu.PrefetchScalarGridSpec(
            num_scalar_prefetch=0,
            grid=grid,
            in_specs=[
                # Weight: one full block, resident/reused across all grid steps.
                pl.BlockSpec((Cout, Cin), lambda n, s: (0, 0)),
                # Input: one batch element x one spatial tile.
                pl.BlockSpec((1, Cin, t_hw), lambda n, s: (n, 0, s)),
            ],
            out_specs=pl.BlockSpec((1, Cout, t_hw), lambda n, s: (n, 0, s)),
        ),
        compiler_params=pltpu.CompilerParams(
            dimension_semantics=("parallel", "parallel"),
        ),
        cost_estimate=cost,
    )(w_mat, x_mat)

    # Free reshape back to NCHW.
    return out.reshape(N, Cout, H, W)


if __name__ == "__main__":
    key = jax.random.PRNGKey(0)
    kx, kw = jax.random.split(key)

    # Shapes implied by the module: Conv2d(192, 768, 1x1) on [1, 192, 14, 14].
    N, Cin, H, W, Cout = 1, 192, 14, 14, 768
    x = jax.random.normal(kx, (N, Cin, H, W), dtype=jnp.float32)
    # Deterministic synthetic weight (PyTorch Conv2d OIHW layout).
    weight = jax.random.normal(kw, (Cout, Cin, 1, 1), dtype=jnp.float32) * 0.05

    out = jax.block_until_ready(conv2d_1x1(x, weight))

    # Sanity check against a plain-JAX reference of the same conv.
    ref = jnp.einsum("nchw,oc->nohw", x, weight.reshape(Cout, Cin))
    assert out.shape == (N, Cout, H, W), out.shape
    assert jnp.allclose(out, ref, atol=1e-3, rtol=1e-3)

    print("KERNEL_OK")
</pallas_src>

<mosaic_0001>
module attributes {stable_mosaic.version = 11 : i64} {
  func.func @_conv1x1_kernel(%arg0: i32, %arg1: i32, %arg2: memref<768x192xf32, #tpu.memory_space<vmem>>, %arg3: memref<1x192x196xf32, #tpu.memory_space<vmem>>, %arg4: memref<1x768x196xf32, #tpu.memory_space<vmem>>) attributes {dimension_semantics = [#tpu.dimension_semantics<parallel>, #tpu.dimension_semantics<parallel>], iteration_bounds = array<i64: 1, 1>, scalar_prefetch = 0 : i64, scratch_operands = 0 : i64, tpu.core_type = #tpu.core_type<tc>, window_params = [{pipeline_mode = #tpu.pipeline_mode<synchronous>, transform_indices = @transform_0, window_bounds = array<i64: 768, 192>}, {transform_indices = @transform_1, window_bounds = array<i64: 1, 192, 196>}, {transform_indices = @transform_2, window_bounds = array<i64: 1, 768, 196>}]} {
    %c0 = arith.constant 0 : index
    %c0_0 = arith.constant 0 : index
    %0 = vector.load %arg2[%c0, %c0_0] : memref<768x192xf32, #tpu.memory_space<vmem>>, vector<768x192xf32>
    %c0_1 = arith.constant 0 : index
    %c0_2 = arith.constant 0 : index
    %c0_3 = arith.constant 0 : index
    %1 = vector.load %arg3[%c0_1, %c0_2, %c0_3] : memref<1x192x196xf32, #tpu.memory_space<vmem>>, vector<1x192x196xf32>
    %2 = vector.shape_cast %1 : vector<1x192x196xf32> to vector<192x196xf32>
    %cst = arith.constant dense<0.000000e+00> : vector<768x196xf32>
    %3 = tpu.matmul %0, %2, %cst {dimension_numbers = #tpu.dot_dimension_numbers<[1], [0], [0], [1], [0, 0, 1, 1], [], []>} : vector<768x192xf32>, vector<192x196xf32>, vector<768x196xf32> -> vector<768x196xf32>
    %c0_4 = arith.constant 0 : index
    %c0_5 = arith.constant 0 : index
    %c0_6 = arith.constant 0 : index
    %4 = vector.load %arg4[%c0_4, %c0_5, %c0_6] : memref<1x768x196xf32, #tpu.memory_space<vmem>>, vector<1x768x196xf32>
    %5 = vector.shape_cast %4 : vector<1x768x196xf32> to vector<768x196xf32>
    %6 = vector.shape_cast %3 : vector<768x196xf32> to vector<1x768x196xf32>
    tpu.vector_store %arg4[%c0_4, %c0_5, %c0_6], %6 {strides = array<i32>} : memref<1x768x196xf32, #tpu.memory_space<vmem>>, vector<1x768x196xf32>,
    return
  }
  func.func @transform_0(%arg0: i32, %arg1: i32) -> (i32, i32) {
    %c0_i32 = arith.constant 0 : i32
    %c0_i32_0 = arith.constant 0 : i32
    %c0_i32_1 = arith.constant 0 : i32
    return %c0_i32, %c0_i32_0 : i32, i32
  }
  func.func @transform_1(%arg0: i32, %arg1: i32) -> (i32, i32, i32) {
    %c0_i32 = arith.constant 0 : i32
    %c0_i32_0 = arith.constant 0 : i32
    return %arg0, %c0_i32, %arg1 : i32, i32, i32
  }
  func.func @transform_2(%arg0: i32, %arg1: i32) -> (i32, i32, i32) {
    %c0_i32 = arith.constant 0 : i32
    %c0_i32_0 = arith.constant 0 : i32
    return %arg0, %c0_i32, %arg1 : i32, i32, i32
  }
}

</mosaic_0001>

<llo_original>
// kernel: tpu_custom_call.1
$region0: #{tpu_custom_call.1}
  #allocation0 [shape = 'u32[]', space=smem, size = 0x4, offset = 0x4, fixed_abs, tag = 'smem constant byte address 0x4 - core index']
  #allocation1 [shape = 'u32[144,128]{1,0:T(1,128)}', space=vmem, size = 0x12000, scoped, tag = 'internal scratch']
  %s0 = inlined_call_operand.vmem [shape: f32[768,192], index: 0, kind: input, shape index: {}]
  %s1 = inlined_call_operand.vmem [shape: f32[1,192,196], index: 1, kind: input, shape index: {}]
  %s2 = inlined_call_operand.vmem [shape: f32[1,768,196], index: 2, kind: output, shape index: {}]
  %s3 = sld [smem:[#allocation0]]
  $region18: #{tpu_custom_call.1} parent=0
    _
  %s5 = ssub.s32 1, %s3
  %s6 = scalar_select 0, %s5, %s3
  // Predicated region
  $region2: #{tpu_custom_call.1} parent=0 // pred_check
    _
  $region3: #{tpu_custom_call.1} parent=0 // pred_check_branch
    %8 = sbr.rel (0) target = $region5
  $region4: #{tpu_custom_call.1} parent=0 // pred_region
    _
  $region5: #{tpu_custom_call.1} parent=0 // pred_fallthru
    _
  // Predicated region
  $region6: #{tpu_custom_call.1} parent=0 // pred_check
    _
  $region7: #{tpu_custom_call.1} parent=0 // pred_check_branch
    %10 = sbr.rel (0) target = $region9
  $region8: #{tpu_custom_call.1} parent=0 // pred_region
    _
  $region9: #{tpu_custom_call.1} parent=0 // pred_fallthru
    _
  %v11 = vld [vmem:[%s0] sm:$0xff]
  %v12 = vld [vmem:[%s0 + $0x8] sm:$0xff]
  %v13 = vld [vmem:[%s0 + $0x10] sm:$0xff]
  %v14 = vld [vmem:[%s0 + $0x18] sm:$0xff]
  %v15 = vld [vmem:[%s0 + $0x20] sm:$0xff]
  %v16 = vld [vmem:[%s0 + $0x28] sm:$0xff]
  %v17 = vld [vmem:[%s0 + $0x30] sm:$0xff]
  %v18 = vld [vmem:[%s0 + $0x38] sm:$0xff]
  %v19 = vld [vmem:[%s0 + $0x40] sm:$0xff]
  %v20 = vld [vmem:[%s0 + $0x48] sm:$0xff]
  %v21 = vld [vmem:[%s0 + $0x50] sm:$0xff]
  %v22 = vld [vmem:[%s0 + $0x58] sm:$0xff]
  %v23 = vld [vmem:[%s0 + $0x60] sm:$0xff]
  %v24 = vld [vmem:[%s0 + $0x68] sm:$0xff]
  %v25 = vld [vmem:[%s0 + $0x70] sm:$0xff]
  %v26 = vld [vmem:[%s0 + $0x78] sm:$0xff]
  %v27 = vld [vmem:[%s0 + $0x80] sm:$0xff]
  %v28 = vld [vmem:[%s0 + $0x88] sm:$0xff]
  %v29 = vld [vmem:[%s0 + $0x90] sm:$0xff]
  %v30 = vld [vmem:[%s0 + $0x98] sm:$0xff]
  %v31 = vld [vmem:[%s0 + $0xa0] sm:$0xff]
  %v32 = vld [vmem:[%s0 + $0xa8] sm:$0xff]
  %v33 = vld [vmem:[%s0 + $0xb0] sm:$0xff]
  %v34 = vld [vmem:[%s0 + $0xb8] sm:$0xff]
  %v35 = vld [vmem:[%s0 + $0xc0] sm:$0xff]
  %v36 = vld [vmem:[%s0 + $0xc8] sm:$0xff]
  %v37 = vld [vmem:[%s0 + $0xd0] sm:$0xff]
  %v38 = vld [vmem:[%s0 + $0xd8] sm:$0xff]
  %v39 = vld [vmem:[%s0 + $0xe0] sm:$0xff]
  %v40 = vld [vmem:[%s0 + $0xe8] sm:$0xff]
  %v41 = vld [vmem:[%s0 + $0xf0] sm:$0xff]
  %v42 = vld [vmem:[%s0 + $0xf8] sm:$0xff]
  %v43 = vld [vmem:[%s0 + $0x100] sm:$0xff]
  %v44 = vld [vmem:[%s0 + $0x108] sm:$0xff]
  %v45 = vld [vmem:[%s0 + $0x110] sm:$0xff]
  %v46 = vld [vmem:[%s0 + $0x118] sm:$0xff]
  %v47 = vld [vmem:[%s0 + $0x120] sm:$0xff]
  %v48 = vld [vmem:[%s0 + $0x128] sm:$0xff]
  %v49 = vld [vmem:[%s0 + $0x130] sm:$0xff]
  %v50 = vld [vmem:[%s0 + $0x138] sm:$0xff]
  %v51 = vld [vmem:[%s0 + $0x140] sm:$0xff]
  %v52 = vld [vmem:[%s0 + $0x148] sm:$0xff]
  %v53 = vld [vmem:[%s0 + $0x150] sm:$0xff]
  %v54 = vld [vmem:[%s0 + $0x158] sm:$0xff]
  %v55 = vld [vmem:[%s0 + $0x160] sm:$0xff]
  %v56 = vld [vmem:[%s0 + $0x168] sm:$0xff]
  %v57 = vld [vmem:[%s0 + $0x170] sm:$0xff]
  %v58 = vld [vmem:[%s0 + $0x178] sm:$0xff]
  %v59 = vld [vmem:[%s0 + $0x180] sm:$0xff]
  %v60 = vld [vmem:[%s0 + $0x188] sm:$0xff]
  %v61 = vld [vmem:[%s0 + $0x190] sm:$0xff]
  %v62 = vld [vmem:[%s0 + $0x198] sm:$0xff]
  %v63 = vld [vmem:[%s0 + $0x1a0] sm:$0xff]
  %v64 = vld [vmem:[%s0 + $0x1a8] sm:$0xff]
  %v65 = vld [vmem:[%s0 + $0x1b0] sm:$0xff]
  %v66 = vld [vmem:[%s0 + $0x1b8] sm:$0xff]
  %v67 = vld [vmem:[%s0 + $0x1c0] sm:$0xff]
  %v68 = vld [vmem:[%s0 + $0x1c8] sm:$0xff]
  %v69 = vld [vmem:[%s0 + $0x1d0] sm:$0xff]
  %v70 = vld [vmem:[%s0 + $0x1d8] sm:$0xff]
  %v71 = vld [vmem:[%s0 + $0x1e0] sm:$0xff]
  %v72 = vld [vmem:[%s0 + $0x1e8] sm:$0xff]
  %v73 = vld [vmem:[%s0 + $0x1f0] sm:$0xff]
  %v74 = vld [vmem:[%s0 + $0x1f8] sm:$0xff]
  %v75 = vld [vmem:[%s0 + $0x200] sm:$0xff]
  %v76 = vld [vmem:[%s0 + $0x208] sm:$0xff]
  %v77 = vld [vmem:[%s0 + $0x210] sm:$0xff]
  %v78 = vld [vmem:[%s0 + $0x218] sm:$0xff]
  %v79 = vld [vmem:[%s0 + $0x220] sm:$0xff]
  %v80 = vld [vmem:[%s0 + $0x228] sm:$0xff]
  %v81 = vld [vmem:[%s0 + $0x230] sm:$0xff]
  %v82 = vld [vmem:[%s0 + $0x238] sm:$0xff]
  %v83 = vld [vmem:[%s0 + $0x240] sm:$0xff]
  %v84 = vld [vmem:[%s0 + $0x248] sm:$0xff]
  %v85 = vld [vmem:[%s0 + $0x250] sm:$0xff]
  %v86 = vld [vmem:[%s0 + $0x258] sm:$0xff]
  %v87 = vld [vmem:[%s0 + $0x260] sm:$0xff]
  %v88 = vld [vmem:[%s0 + $0x268] sm:$0xff]
  %v89 = vld [vmem:[%s0 + $0x270] sm:$0xff]
  %v90 = vld [vmem:[%s0 + $0x278] sm:$0xff]
  %v91 = vld [vmem:[%s0 + $0x280] sm:$0xff]
  %v92 = vld [vmem:[%s0 + $0x288] sm:$0xff]
  %v93 = vld [vmem:[%s0 + $0x290] sm:$0xff]
  %v94 = vld [vmem:[%s0 + $0x298] sm:$0xff]
  %v95 = vld [vmem:[%s0 + $0x2a0] sm:$0xff]
  %v96 = vld [vmem:[%s0 + $0x2a8] sm:$0xff]
  %v97 = vld [vmem:[%s0 + $0x2b0] sm:$0xff]
  %v98 = vld [vmem:[%s0 + $0x2b8] sm:$0xff]
  %v99 = vld [vmem:[%s0 + $0x2c0] sm:$0xff]
  %v100 = vld [vmem:[%s0 + $0x2c8] sm:$0xff]
  %v101 = vld [vmem:[%s0 + $0x2d0] sm:$0xff]
  %v102 = vld [vmem:[%s0 + $0x2d8] sm:$0xff]
  %v103 = vld [vmem:[%s0 + $0x2e0] sm:$0xff]
  %v104 = vld [vmem:[%s0 + $0x2e8] sm:$0xff]
  %v105 = vld [vmem:[%s0 + $0x2f0] sm:$0xff]
  %v106 = vld [vmem:[%s0 + $0x2f8] sm:$0xff]
  %v107 = vld [vmem:[%s0 + $0x300] sm:$0xff]
  %v108 = vld [vmem:[%s0 + $0x308] sm:$0xff]
  %v109 = vld [vmem:[%s0 + $0x310] sm:$0xff]
  %v110 = vld [vmem:[%s0 + $0x318] sm:$0xff]
  %v111 = vld [vmem:[%s0 + $0x320] sm:$0xff]
  %v112 = vld [vmem:[%s0 + $0x328] sm:$0xff]
  %v113 = vld [vmem:[%s0 + $0x330] sm:$0xff]
  %v114 = vld [vmem:[%s0 + $0x338] sm:$0xff]
  %v115 = vld [vmem:[%s0 + $0x340] sm:$0xff]
  %v116 = vld [vmem:[%s0 + $0x348] sm:$0xff]
  %v117 = vld [vmem:[%s0 + $0x350] sm:$0xff]
  %v118 = vld [vmem:[%s0 + $0x358] sm:$0xff]
  %v119 = vld [vmem:[%s0 + $0x360] sm:$0xff]
  %v120 = vld [vmem:[%s0 + $0x368] sm:$0xff]
  %v121 = vld [vmem:[%s0 + $0x370] sm:$0xff]
  %v122 = vld [vmem:[%s0 + $0x378] sm:$0xff]
  %v123 = vld [vmem:[%s0 + $0x380] sm:$0xff]
  %v124 = vld [vmem:[%s0 + $0x388] sm:$0xff]
  %v125 = vld [vmem:[%s0 + $0x390] sm:$0xff]
  %v126 = vld [vmem:[%s0 + $0x398] sm:$0xff]
  %v127 = vld [vmem:[%s0 + $0x3a0] sm:$0xff]
  %v128 = vld [vmem:[%s0 + $0x3a8] sm:$0xff]
  %v129 = vld [vmem:[%s0 + $0x3b0] sm:$0xff]
  %v130 = vld [vmem:[%s0 + $0x3b8] sm:$0xff]
  %v131 = vld [vmem:[%s0 + $0x3c0] sm:$0xff]
  %v132 = vld [vmem:[%s0 + $0x3c8] sm:$0xff]
  %v133 = vld [vmem:[%s0 + $0x3d0] sm:$0xff]
  %v134 = vld [vmem:[%s0 + $0x3d8] sm:$0xff]
  %v135 = vld [vmem:[%s0 + $0x3e0] sm:$0xff]
  %v136 = vld [vmem:[%s0 + $0x3e8] sm:$0xff]
  %v137 = vld [vmem:[%s0 + $0x3f0] sm:$0xff]
  %v138 = vld [vmem:[%s0 + $0x3f8] sm:$0xff]
  %v139 = vld [vmem:[%s0 + $0x400] sm:$0xff]
  %v140 = vld [vmem:[%s0 + $0x408] sm:$0xff]
  %v141 = vld [vmem:[%s0 + $0x410] sm:$0xff]
  %v142 = vld [vmem:[%s0 + $0x418] sm:$0xff]
  %v143 = vld [vmem:[%s0 + $0x420] sm:$0xff]
  %v144 = vld [vmem:[%s0 + $0x428] sm:$0xff]
  %v145 = vld [vmem:[%s0 + $0x430] sm:$0xff]
  %v146 = vld [vmem:[%s0 + $0x438] sm:$0xff]
  %v147 = vld [vmem:[%s0 + $0x440] sm:$0xff]
  %v148 = vld [vmem:[%s0 + $0x448] sm:$0xff]
  %v149 = vld [vmem:[%s0 + $0x450] sm:$0xff]
  %v150 = vld [vmem:[%s0 + $0x458] sm:$0xff]
  %v151 = vld [vmem:[%s0 + $0x460] sm:$0xff]
  %v152 = vld [vmem:[%s0 + $0x468] sm:$0xff]
  %v153 = vld [vmem:[%s0 + $0x470] sm:$0xff]
  %v154 = vld [vmem:[%s0 + $0x478] sm:$0xff]
  %v155 = vld [vmem:[%s0 + $0x480] sm:$0xff]
  %v156 = vld [vmem:[%s0 + $0x488] sm:$0xff]
  %v157 = vld [vmem:[%s0 + $0x490] sm:$0xff]
  %v158 = vld [vmem:[%s0 + $0x498] sm:$0xff]
  %v159 = vld [vmem:[%s0 + $0x4a0] sm:$0xff]
  %v160 = vld [vmem:[%s0 + $0x4a8] sm:$0xff]
  %v161 = vld [vmem:[%s0 + $0x4b0] sm:$0xff]
  %v162 = vld [vmem:[%s0 + $0x4b8] sm:$0xff]
  %v163 = vld [vmem:[%s0 + $0x4c0] sm:$0xff]
  %v164 = vld [vmem:[%s0 + $0x4c8] sm:$0xff]
  %v165 = vld [vmem:[%s0 + $0x4d0] sm:$0xff]
  %v166 = vld [vmem:[%s0 + $0x4d8] sm:$0xff]
  %v167 = vld [vmem:[%s0 + $0x4e0] sm:$0xff]
  %v168 = vld [vmem:[%s0 + $0x4e8] sm:$0xff]
  %v169 = vld [vmem:[%s0 + $0x4f0] sm:$0xff]
  %v170 = vld [vmem:[%s0 + $0x4f8] sm:$0xff]
  %v171 = vld [vmem:[%s0 + $0x500] sm:$0xff]
  %v172 = vld [vmem:[%s0 + $0x508] sm:$0xff]
  %v173 = vld [vmem:[%s0 + $0x510] sm:$0xff]
  %v174 = vld [vmem:[%s0 + $0x518] sm:$0xff]
  %v175 = vld [vmem:[%s0 + $0x520] sm:$0xff]
  %v176 = vld [vmem:[%s0 + $0x528] sm:$0xff]
  %v177 = vld [vmem:[%s0 + $0x530] sm:$0xff]
  %v178 = vld [vmem:[%s0 + $0x538] sm:$0xff]
  %v179 = vld [vmem:[%s0 + $0x540] sm:$0xff]
  %v180 = vld [vmem:[%s0 + $0x548] sm:$0xff]
  %v181 = vld [vmem:[%s0 + $0x550] sm:$0xff]
  %v182 = vld [vmem:[%s0 + $0x558] sm:$0xff]
  %v183 = vld [vmem:[%s0 + $0x560] sm:$0xff]
  %v184 = vld [vmem:[%s0 + $0x568] sm:$0xff]
  %v185 = vld [vmem:[%s0 + $0x570] sm:$0xff]
  %v186 = vld [vmem:[%s0 + $0x578] sm:$0xff]
  %v187 = vld [vmem:[%s0 + $0x580] sm:$0xff]
  %v188 = vld [vmem:[%s0 + $0x588] sm:$0xff]
  %v189 = vld [vmem:[%s0 + $0x590] sm:$0xff]
  %v190 = vld [vmem:[%s0 + $0x598] sm:$0xff]
  %v191 = vld [vmem:[%s0 + $0x5a0] sm:$0xff]
  %v192 = vld [vmem:[%s0 + $0x5a8] sm:$0xff]
  %v193 = vld [vmem:[%s0 + $0x5b0] sm:$0xff]
  %v194 = vld [vmem:[%s0 + $0x5b8] sm:$0xff]
  %v195 = vld [vmem:[%s0 + $0x5c0] sm:$0xff]
  %v196 = vld [vmem:[%s0 + $0x5c8] sm:$0xff]
  %v197 = vld [vmem:[%s0 + $0x5d0] sm:$0xff]
  %v198 = vld [vmem:[%s0 + $0x5d8] sm:$0xff]
  %v199 = vld [vmem:[%s0 + $0x5e0] sm:$0xff]
  %v200 = vld [vmem:[%s0 + $0x5e8] sm:$0xff]
  %v201 = vld [vmem:[%s0 + $0x5f0] sm:$0xff]
  %v202 = vld [vmem:[%s0 + $0x5f8] sm:$0xff]
  %v203 = vld [vmem:[%s1] sm:$0xff]
  %v204 = vld [vmem:[%s1 + $0x8] sm:$0xff]
  %v205 = vld [vmem:[%s1 + $0x10] sm:$0xff]
  %v206 = vld [vmem:[%s1 + $0x18] sm:$0xff]
  %v207 = vld [vmem:[%s1 + $0x20] sm:$0xff]
  %v208 = vld [vmem:[%s1 + $0x28] sm:$0xff]
  %v209 = vld [vmem:[%s1 + $0x30] sm:$0xff]
  %v210 = vld [vmem:[%s1 + $0x38] sm:$0xff]
  %v211 = vld [vmem:[%s1 + $0x40] sm:$0xff]
  %v212 = vld [vmem:[%s1 + $0x48] sm:$0xff]
  %v213 = vld [vmem:[%s1 + $0x50] sm:$0xff]
  %v214 = vld [vmem:[%s1 + $0x58] sm:$0xff]
  %v215 = vld [vmem:[%s1 + $0x60] sm:$0xff]
  %v216 = vld [vmem:[%s1 + $0x68] sm:$0xff]
  %v217 = vld [vmem:[%s1 + $0x70] sm:$0xff]
  %v218 = vld [vmem:[%s1 + $0x78] sm:$0xff]
  %v219 = vld [vmem:[%s1 + $0x80] sm:$0xff]
  %v220 = vld [vmem:[%s1 + $0x88] sm:$0xff]
  %v221 = vld [vmem:[%s1 + $0x90] sm:$0xff]
  %v222 = vld [vmem:[%s1 + $0x98] sm:$0xff]
  %v223 = vld [vmem:[%s1 + $0xa0] sm:$0xff]
  %v224 = vld [vmem:[%s1 + $0xa8] sm:$0xff]
  %v225 = vld [vmem:[%s1 + $0xb0] sm:$0xff]
  %v226 = vld [vmem:[%s1 + $0xb8] sm:$0xff]
  %v227 = vld [vmem:[%s1 + $0xc0] sm:$0xff]
  %v228 = vld [vmem:[%s1 + $0xc8] sm:$0xff]
  %v229 = vld [vmem:[%s1 + $0xd0] sm:$0xff]
  %v230 = vld [vmem:[%s1 + $0xd8] sm:$0xff]
  %v231 = vld [vmem:[%s1 + $0xe0] sm:$0xff]
  %v232 = vld [vmem:[%s1 + $0xe8] sm:$0xff]
  %v233 = vld [vmem:[%s1 + $0xf0] sm:$0xff]
  %v234 = vld [vmem:[%s1 + $0xf8] sm:$0xff]
  %v235 = vld [vmem:[%s1 + $0x100] sm:$0xff]
  %v236 = vld [vmem:[%s1 + $0x108] sm:$0xff]
  %v237 = vld [vmem:[%s1 + $0x110] sm:$0xff]
  %v238 = vld [vmem:[%s1 + $0x118] sm:$0xff]
  %v239 = vld [vmem:[%s1 + $0x120] sm:$0xff]
  %v240 = vld [vmem:[%s1 + $0x128] sm:$0xff]
  %v241 = vld [vmem:[%s1 + $0x130] sm:$0xff]
  %v242 = vld [vmem:[%s1 + $0x138] sm:$0xff]
  %v243 = vld [vmem:[%s1 + $0x140] sm:$0xff]
  %v244 = vld [vmem:[%s1 + $0x148] sm:$0xff]
  %v245 = vld [vmem:[%s1 + $0x150] sm:$0xff]
  %v246 = vld [vmem:[%s1 + $0x158] sm:$0xff]
  %v247 = vld [vmem:[%s1 + $0x160] sm:$0xff]
  %v248 = vld [vmem:[%s1 + $0x168] sm:$0xff]
  %v249 = vld [vmem:[%s1 + $0x170] sm:$0xff]
  %v250 = vld [vmem:[%s1 + $0x178] sm:$0xff]
  %vm251 = vcmask 523264
  %v253 = vsel %vm251, %v12, 0
  %v256 = vsel %vm251, %v14, 0
  %v259 = vsel %vm251, %v16, 0
  %v262 = vsel %vm251, %v18, 0
  %v265 = vsel %vm251, %v20, 0
  %v268 = vsel %vm251, %v22, 0
  %v271 = vsel %vm251, %v24, 0
  %v274 = vsel %vm251, %v26, 0
  %v277 = vsel %vm251, %v28, 0
  %v280 = vsel %vm251, %v30, 0
  %v283 = vsel %vm251, %v32, 0
  %v286 = vsel %vm251, %v34, 0
  %v289 = vsel %vm251, %v36, 0
  %v292 = vsel %vm251, %v38, 0
  %v295 = vsel %vm251, %v40, 0
  %v298 = vsel %vm251, %v42, 0
  %v301 = vsel %vm251, %v44, 0
  %v304 = vsel %vm251, %v46, 0
  %v307 = vsel %vm251, %v48, 0
  %v310 = vsel %vm251, %v50, 0
  %v313 = vsel %vm251, %v52, 0
  %v316 = vsel %vm251, %v54, 0
  %v319 = vsel %vm251, %v56, 0
  %v322 = vsel %vm251, %v58, 0
  %v325 = vsel %vm251, %v60, 0
  %v328 = vsel %vm251, %v62, 0
  %v331 = vsel %vm251, %v64, 0
  %v334 = vsel %vm251, %v66, 0
  %v337 = vsel %vm251, %v68, 0
  %v340 = vsel %vm251, %v70, 0
  %v343 = vsel %vm251, %v72, 0
  %v346 = vsel %vm251, %v74, 0
  %v349 = vsel %vm251, %v76, 0
  %v352 = vsel %vm251, %v78, 0
  %v355 = vsel %vm251, %v80, 0
  %v358 = vsel %vm251, %v82, 0
  %v361 = vsel %vm251, %v84, 0
  %v364 = vsel %vm251, %v86, 0
  %v367 = vsel %vm251, %v88, 0
  %v370 = vsel %vm251, %v90, 0
  %v373 = vsel %vm251, %v92, 0
  %v376 = vsel %vm251, %v94, 0
  %v379 = vsel %vm251, %v96, 0
  %v382 = vsel %vm251, %v98, 0
  %v385 = vsel %vm251, %v100, 0
  %v388 = vsel %vm251, %v102, 0
  %v391 = vsel %vm251, %v104, 0
  %v394 = vsel %vm251, %v106, 0
  %v397 = vsel %vm251, %v108, 0
  %v400 = vsel %vm251, %v110, 0
  %v403 = vsel %vm251, %v112, 0
  %v406 = vsel %vm251, %v114, 0
  %v409 = vsel %vm251, %v116, 0
  %v412 = vsel %vm251, %v118, 0
  %v415 = vsel %vm251, %v120, 0
  %v418 = vsel %vm251, %v122, 0
  %v421 = vsel %vm251, %v124, 0
  %v424 = vsel %vm251, %v126, 0
  %v427 = vsel %vm251, %v128, 0
  %v430 = vsel %vm251, %v130, 0
  %v433 = vsel %vm251, %v132, 0
  %v436 = vsel %vm251, %v134, 0
  %v439 = vsel %vm251, %v136, 0
  %v442 = vsel %vm251, %v138, 0
  %v445 = vsel %vm251, %v140, 0
  %v448 = vsel %vm251, %v142, 0
  %v451 = vsel %vm251, %v144, 0
  %v454 = vsel %vm251, %v146, 0
  %v457 = vsel %vm251, %v148, 0
  %v460 = vsel %vm251, %v150, 0
  %v463 = vsel %vm251, %v152, 0
  %v466 = vsel %vm251, %v154, 0
  %v469 = vsel %vm251, %v156, 0
  %v472 = vsel %vm251, %v158, 0
  %v475 = vsel %vm251, %v160, 0
  %v478 = vsel %vm251, %v162, 0
  %v481 = vsel %vm251, %v164, 0
  %v484 = vsel %vm251, %v166, 0
  %v487 = vsel %vm251, %v168, 0
  %v490 = vsel %vm251, %v170, 0
  %v493 = vsel %vm251, %v172, 0
  %v496 = vsel %vm251, %v174, 0
  %v499 = vsel %vm251, %v176, 0
  %v502 = vsel %vm251, %v178, 0
  %v505 = vsel %vm251, %v180, 0
  %v508 = vsel %vm251, %v182, 0
  %v511 = vsel %vm251, %v184, 0
  %v514 = vsel %vm251, %v186, 0
  %v517 = vsel %vm251, %v188, 0
  %v520 = vsel %vm251, %v190, 0
  %v523 = vsel %vm251, %v192, 0
  %v526 = vsel %vm251, %v194, 0
  %v529 = vsel %vm251, %v196, 0
  %v532 = vsel %vm251, %v198, 0
  %v535 = vsel %vm251, %v200, 0
  %v538 = vsel %vm251, %v202, 0
  %540 = vmatprep.subr.mxu0 %v204
  %541 = vmatpush1.msra.mxu0 %v203
  %542 = vmatprep.subr.mxu0 %v206
  %543 = vmatpush1.msra.mxu0 %v205
  %544 = vmatprep.subr.mxu0 %v208
  %545 = vmatpush1.msra.mxu0 %v207
  %546 = vmatprep.subr.mxu0 %v210
  %547 = vmatpush1.msra.mxu0 %v209
  %548 = vmatprep.subr.mxu0 %v212
  %549 = vmatpush1.msra.mxu0 %v211
  %550 = vmatprep.subr.mxu0 %v214
  %551 = vmatpush1.msra.mxu0 %v213
  %552 = vmatprep.subr.mxu0 %v216
  %553 = vmatpush1.msra.mxu0 %v215
  %554 = vmatprep.subr.mxu0 %v218
  %555 = vmatpush1.msra.mxu0 %v217
  %556 = vmatprep.subr.mxu0 %v220
  %557 = vmatpush1.msra.mxu0 %v219
  %558 = vmatprep.subr.mxu0 %v222
  %559 = vmatpush1.msra.mxu0 %v221
  %560 = vmatprep.subr.mxu0 %v224
  %561 = vmatpush1.msra.mxu0 %v223
  %562 = vmatprep.subr.mxu0 %v226
  %563 = vmatpush1.msra.mxu0 %v225
  %564 = vmatprep.subr.mxu0 %v228
  %565 = vmatpush1.msra.mxu0 %v227
  %566 = vmatprep.subr.mxu0 %v230
  %567 = vmatpush1.msra.mxu0 %v229
  %568 = vmatprep.subr.mxu0 %v232
  %569 = vmatpush1.msra.mxu0 %v231
  %570 = vmatprep.subr.mxu0 %v234
  %571 = vmatpush1.msra.mxu0 %v233
  %572 = vmatprep.subr.mxu0 %v236
  %573 = vmatpush1.msra.mxu0 %v235
  %574 = vmatprep.subr.mxu0 %v238
  %575 = vmatpush1.msra.mxu0 %v237
  %576 = vmatprep.subr.mxu0 %v240
  %577 = vmatpush1.msra.mxu0 %v239
  %578 = vmatprep.subr.mxu0 %v242
  %579 = vmatpush1.msra.mxu0 %v241
  %580 = vmatprep.subr.mxu0 %v244
  %581 = vmatpush1.msra.mxu0 %v243
  %582 = vmatprep.subr.mxu0 %v246
  %583 = vmatpush1.msra.mxu0 %v245
  %584 = vmatprep.subr.mxu0 %v248
  %585 = vmatpush1.msra.mxu0 %v247
  %586 = vmatprep.subr.mxu0 %v250
  %587 = vmatpush1.msra.mxu0 %v249
  %588 = vmatprep.subr.mxu0 0.0
  %589 = vmatpush1.msra.mxu0 0.0
  %590 = vmatprep.subr.mxu0 0.0
  %591 = vmatpush1.msra.mxu0 0.0
  %592 = vmatprep.subr.mxu0 0.0
  %593 = vmatpush1.msra.mxu0 0.0
  %594 = vmatprep.subr.mxu0 0.0
  %595 = vmatpush1.msra.mxu0 0.0
  %596 = vmatprep.subr.mxu0 0.0
  %597 = vmatpush1.msra.mxu0 0.0
  %598 = vmatprep.subr.mxu0 0.0
  %599 = vmatpush1.msra.mxu0 0.0
  %600 = vmatprep.subr.mxu0 0.0
  %601 = vmatpush1.msra.mxu0 0.0
  %602 = vmatprep.subr.mxu0 0.0
  %603 = vmatpush1.msra.mxu0 0.0
  %604 = vmatprep.mubr.f32.mxu0 %v253
  %605 = vmatmul.mubr.f32.gmra.mrb[0].mxu0 %v11
  %v606 = vpop.f32.mrb[0].mxu0
  %v607 = vadd.f32 0.0, %v606
  %v608 = vpop.f32.mrb[0].mxu0
  %v609 = vadd.f32 0.0, %v608
  %610 = vmatprep.mubr.f32.mxu0 %v256
  %611 = vmatmul.mubr.f32.gmra.mrb[0].mxu0 %v13
  %v612 = vpop.f32.mrb[0].mxu0
  %v613 = vadd.f32 0.0, %v612
  %v614 = vpop.f32.mrb[0].mxu0
  %v615 = vadd.f32 0.0, %v614
  %616 = vmatprep.mubr.f32.mxu0 %v259
  %617 = vmatmul.mubr.f32.gmra.mrb[0].mxu0 %v15
  %v618 = vpop.f32.mrb[0].mxu0
  %v619 = vadd.f32 0.0, %v618
  %v620 = vpop.f32.mrb[0].mxu0
  %v621 = vadd.f32 0.0, %v620
  %622 = vmatprep.mubr.f32.mxu0 %v262
  %623 = vmatmul.mubr.f32.gmra.mrb[0].mxu0 %v17
  %v624 = vpop.f32.mrb[0].mxu0
  %v625 = vadd.f32 0.0, %v624
  %v626 = vpop.f32.mrb[0].mxu0
  %v627 = vadd.f32 0.0, %v626
  %628 = vmatprep.mubr.f32.mxu0 %v265
  %629 = vmatmul.mubr.f32.gmra.mrb[0].mxu0 %v19
  %v630 = vpop.f32.mrb[0].mxu0
  %v631 = vadd.f32 0.0, %v630
  %v632 = vpop.f32.mrb[0].mxu0
  %v633 = vadd.f32 0.0, %v632
  %634 = vmatprep.mubr.f32.mxu0 %v268
  %635 = vmatmul.mubr.f32.gmra.mrb[0].mxu0 %v21
  %v636 = vpop.f32.mrb[0].mxu0
  %v637 = vadd.f32 0.0, %v636
  %v638 = vpop.f32.mrb[0].mxu0
  %v639 = vadd.f32 0.0, %v638
  %640 = vmatprep.mubr.f32.mxu0 %v271
  %641 = vmatmul.mubr.f32.gmra.mrb[0].mxu0 %v23
  %v642 = vpop.f32.mrb[0].mxu0
  %v643 = vadd.f32 0.0, %v642
  %v644 = vpop.f32.mrb[0].mxu0
  %v645 = vadd.f32 0.0, %v644
  %646 = vmatprep.mubr.f32.mxu0 %v274
  %647 = vmatmul.mubr.f32.gmra.mrb[0].mxu0 %v25
  %v648 = vpop.f32.mrb[0].mxu0
  %v649 = vadd.f32 0.0, %v648
  %v650 = vpop.f32.mrb[0].mxu0
  %v651 = vadd.f32 0.0, %v650
  %652 = vmatprep.mubr.f32.mxu0 %v277
  %653 = vmatmul.mubr.f32.gmra.mrb[0].mxu0 %v27
  %v654 = vpop.f32.mrb[0].mxu0
  %v655 = vadd.f32 0.0, %v654
  %v656 = vpop.f32.mrb[0].mxu0
  %v657 = vadd.f32 0.0, %v656
  %658 = vmatprep.mubr.f32.mxu0 %v280
  %659 = vmatmul.mubr.f32.gmra.mrb[0].mxu0 %v29
  %v660 = vpop.f32.mrb[0].mxu0
  %v661 = vadd.f32 0.0, %v660
  %v662 = vpop.f32.mrb[0].mxu0
  %v663 = vadd.f32 0.0, %v662
  %664 = vmatprep.mubr.f32.mxu0 %v283
  %665 = vmatmul.mubr.f32.gmra.mrb[0].mxu0 %v31
  %v666 = vpop.f32.mrb[0].mxu0
  %v667 = vadd.f32 0.0, %v666
  %v668 = vpop.f32.mrb[0].mxu0
  %v669 = vadd.f32 0.0, %v668
  %670 = vmatprep.mubr.f32.mxu0 %v286
  %671 = vmatmul.mubr.f32.gmra.mrb[0].mxu0 %v33
  %v672 = vpop.f32.mrb[0].mxu0
  %v673 = vadd.f32 0.0, %v672
  %v674 = vpop.f32.mrb[0].mxu0
  %v675 = vadd.f32 0.0, %v674
  %676 = vmatprep.mubr.f32.mxu0 %v289
  %677 = vmatmul.mubr.f32.gmra.mrb[0].mxu0 %v35
  %v678 = vpop.f32.mrb[0].mxu0
  %v679 = vadd.f32 0.0, %v678
  %v680 = vpop.f32.mrb[0].mxu0
  %v681 = vadd.f32 0.0, %v680
  %682 = vmatprep.mubr.f32.mxu0 %v292
  %683 = vmatmul.mubr.f32.gmra.mrb[0].mxu0 %v37
  %v684 = vpop.f32.mrb[0].mxu0
  %v685 = vadd.f32 0.0, %v684
  %v686 = vpop.f32.mrb[0].mxu0
  %v687 = vadd.f32 0.0, %v686
  %688 = vmatprep.mubr.f32.mxu0 %v295
  %689 = vmatmul.mubr.f32.gmra.mrb[0].mxu0 %v39
  %v690 = vpop.f32.mrb[0].mxu0
  %v691 = vadd.f32 0.0, %v690
  %v692 = vpop.f32.mrb[0].mxu0
  %v693 = vadd.f32 0.0, %v692
  %694 = vmatprep.mubr.f32.mxu0 %v298
  %695 = vmatmul.mubr.f32.gmra.mrb[0].mxu0 %v41
  %v696 = vpop.f32.mrb[0].mxu0
  %v697 = vadd.f32 0.0, %v696
  %v698 = vpop.f32.mrb[0].mxu0
  %v699 = vadd.f32 0.0, %v698
  %700 = vmatprep.mubr.f32.mxu0 %v301
  %701 = vmatmul.mubr.f32.gmra.mrb[0].mxu0 %v43
  %v702 = vpop.f32.mrb[0].mxu0
  %v703 = vadd.f32 0.0, %v702
  %v704 = vpop.f32.mrb[0].mxu0
  %v705 = vadd.f32 0.0, %v704
  %706 = vmatprep.mubr.f32.mxu0 %v304
  %707 = vmatmul.mubr.f32.gmra.mrb[0].mxu0 %v45
  %v708 = vpop.f32.mrb[0].mxu0
  %v709 = vadd.f32 0.0, %v708
  %v710 = vpop.f32.mrb[0].mxu0
  %v711 = vadd.f32 0.0, %v710
  %712 = vmatprep.mubr.f32.mxu0 %v307
  %713 = vmatmul.mubr.f32.gmra.mrb[0].mxu0 %v47
  %v714 = vpop.f32.mrb[0].mxu0
  %v715 = vadd.f32 0.0, %v714
  %v716 = vpop.f32.mrb[0].mxu0
  %v717 = vadd.f32 0.0, %v716
  %718 = vmatprep.mubr.f32.mxu0 %v310
  %719 = vmatmul.mubr.f32.gmra.mrb[0].mxu0 %v49
  %v720 = vpop.f32.mrb[0].mxu0
  %v721 = vadd.f32 0.0, %v720
  %v722 = vpop.f32.mrb[0].mxu0
  %v723 = vadd.f32 0.0, %v722
  %724 = vmatprep.mubr.f32.mxu0 %v313
  %725 = vmatmul.mubr.f32.gmra.mrb[0].mxu0 %v51
  %v726 = vpop.f32.mrb[0].mxu0
  %v727 = vadd.f32 0.0, %v726
  %v728 = vpop.f32.mrb[0].mxu0
  %v729 = vadd.f32 0.0, %v728
  %730 = vmatprep.mubr.f32.mxu0 %v316
  %731 = vmatmul.mubr.f32.gmra.mrb[0].mxu0 %v53
  %v732 = vpop.f32.mrb[0].mxu0
  %v733 = vadd.f32 0.0, %v732
  %v734 = vpop.f32.mrb[0].mxu0
  %v735 = vadd.f32 0.0, %v734
  %736 = vmatprep.mubr.f32.mxu0 %v319
  %737 = vmatmul.mubr.f32.gmra.mrb[0].mxu0 %v55
  %v738 = vpop.f32.mrb[0].mxu0
  %v739 = vadd.f32 0.0, %v738
  %v740 = vpop.f32.mrb[0].mxu0
  %v741 = vadd.f32 0.0, %v740
  %742 = vmatprep.mubr.f32.mxu0 %v322
  %743 = vmatmul.mubr.f32.gmra.mrb[0].mxu0 %v57
  %v744 = vpop.f32.mrb[0].mxu0
  %v745 = vadd.f32 0.0, %v744
  %v746 = vpop.f32.mrb[0].mxu0
  %v747 = vadd.f32 0.0, %v746
  %748 = vmatprep.mubr.f32.mxu0 %v325
  %749 = vmatmul.mubr.f32.gmra.mrb[0].mxu0 %v59
  %v750 = vpop.f32.mrb[0].mxu0
  %v751 = vadd.f32 0.0, %v750
  %v752 = vpop.f32.mrb[0].mxu0
  %v753 = vadd.f32 0.0, %v752
  %754 = vmatprep.mubr.f32.mxu0 %v328
  %755 = vmatmul.mubr.f32.gmra.mrb[0].mxu0 %v61
  %v756 = vpop.f32.mrb[0].mxu0
  %v757 = vadd.f32 0.0, %v756
  %v758 = vpop.f32.mrb[0].mxu0
  %v759 = vadd.f32 0.0, %v758
  %760 = vmatprep.mubr.f32.mxu0 %v331
  %761 = vmatmul.mubr.f32.gmra.mrb[0].mxu0 %v63
  %v762 = vpop.f32.mrb[0].mxu0
  %v763 = vadd.f32 0.0, %v762
  %v764 = vpop.f32.mrb[0].mxu0
  %v765 = vadd.f32 0.0, %v764
  %766 = vmatprep.mubr.f32.mxu0 %v334
  %767 = vmatmul.mubr.f32.gmra.mrb[0].mxu0 %v65
  %v768 = vpop.f32.mrb[0].mxu0
  %v769 = vadd.f32 0.0, %v768
  %v770 = vpop.f32.mrb[0].mxu0
  %v771 = vadd.f32 0.0, %v770
  %772 = vmatprep.mubr.f32.mxu0 %v337
  %773 = vmatmul.mubr.f32.gmra.mrb[0].mxu0 %v67
  %v774 = vpop.f32.mrb[0].mxu0
  %v775 = vadd.f32 0.0, %v774
  %v776 = vpop.f32.mrb[0].mxu0
  %v777 = vadd.f32 0.0, %v776
  %778 = vmatprep.mubr.f32.mxu0 %v340
  %779 = vmatmul.mubr.f32.gmra.mrb[0].mxu0 %v69
  %v780 = vpop.f32.mrb[0].mxu0
  %v781 = vadd.f32 0.0, %v780
  %v782 = vpop.f32.mrb[0].mxu0
  %v783 = vadd.f32 0.0, %v782
  %784 = vmatprep.mubr.f32.mxu0 %v343
  %785 = vmatmul.mubr.f32.gmra.mrb[0].mxu0 %v71
  %v786 = vpop.f32.mrb[0].mxu0
  %v787 = vadd.f32 0.0, %v786
  %v788 = vpop.f32.mrb[0].mxu0
  %v789 = vadd.f32 0.0, %v788
  %790 = vmatprep.mubr.f32.mxu0 %v346
  %791 = vmatmul.mubr.f32.gmra.mrb[0].mxu0 %v73
  %v792 = vpop.f32.mrb[0].mxu0
  %v793 = vadd.f32 0.0, %v792
  %v794 = vpop.f32.mrb[0].mxu0
  %v795 = vadd.f32 0.0, %v794
  %796 = vmatprep.mubr.f32.mxu0 %v349
  %797 = vmatmul.mubr.f32.gmra.mrb[0].mxu0 %v75
  %v798 = vpop.f32.mrb[0].mxu0
  %v799 = vadd.f32 0.0, %v798
  %v800 = vpop.f32.mrb[0].mxu0
  %v801 = vadd.f32 0.0, %v800
  %802 = vmatprep.mubr.f32.mxu0 %v352
  %803 = vmatmul.mubr.f32.gmra.mrb[0].mxu0 %v77
  %v804 = vpop.f32.mrb[0].mxu0
  %v805 = vadd.f32 0.0, %v804
  %v806 = vpop.f32.mrb[0].mxu0
  %v807 = vadd.f32 0.0, %v806
  %808 = vmatprep.mubr.f32.mxu0 %v355
  %809 = vmatmul.mubr.f32.gmra.mrb[0].mxu0 %v79
  %v810 = vpop.f32.mrb[0].mxu0
  %v811 = vadd.f32 0.0, %v810
  %v812 = vpop.f32.mrb[0].mxu0
  %v813 = vadd.f32 0.0, %v812
  %814 = vmatprep.mubr.f32.mxu0 %v358
  %815 = vmatmul.mubr.f32.gmra.mrb[0].mxu0 %v81
  %v816 = vpop.f32.mrb[0].mxu0
  %v817 = vadd.f32 0.0, %v816
  %v818 = vpop.f32.mrb[0].mxu0
  %v819 = vadd.f32 0.0, %v818
  %820 = vmatprep.mubr.f32.mxu0 %v361
  %821 = vmatmul.mubr.f32.gmra.mrb[0].mxu0 %v83
  %v822 = vpop.f32.mrb[0].mxu0
  %v823 = vadd.f32 0.0, %v822
  %v824 = vpop.f32.mrb[0].mxu0
  %v825 = vadd.f32 0.0, %v824
  %826 = vmatprep.mubr.f32.mxu0 %v364
  %827 = vmatmul.mubr.f32.gmra.mrb[0].mxu0 %v85
  %v828 = vpop.f32.mrb[0].mxu0
  %v829 = vadd.f32 0.0, %v828
  %v830 = vpop.f32.mrb[0].mxu0
  %v831 = vadd.f32 0.0, %v830
  %832 = vmatprep.mubr.f32.mxu0 %v367
  %833 = vmatmul.mubr.f32.gmra.mrb[0].mxu0 %v87
  %v834 = vpop.f32.mrb[0].mxu0
  %v835 = vadd.f32 0.0, %v834
  %v836 = vpop.f32.mrb[0].mxu0
  %v837 = vadd.f32 0.0, %v836
  %838 = vmatprep.mubr.f32.mxu0 %v370
  %839 = vmatmul.mubr.f32.gmra.mrb[0].mxu0 %v89
  %v840 = vpop.f32.mrb[0].mxu0
  %v841 = vadd.f32 0.0, %v840
  %v842 = vpop.f32.mrb[0].mxu0
  %v843 = vadd.f32 0.0, %v842
  %844 = vmatprep.mubr.f32.mxu0 %v373
  %845 = vmatmul.mubr.f32.gmra.mrb[0].mxu0 %v91
  %v846 = vpop.f32.mrb[0].mxu0
  %v847 = vadd.f32 0.0, %v846
  %v848 = vpop.f32.mrb[0].mxu0
  %v849 = vadd.f32 0.0, %v848
  %850 = vmatprep.mubr.f32.mxu0 %v376
  %851 = vmatmul.mubr.f32.gmra.mrb[0].mxu0 %v93
  %v852 = vpop.f32.mrb[0].mxu0
  %v853 = vadd.f32 0.0, %v852
  %v854 = vpop.f32.mrb[0].mxu0
  %v855 = vadd.f32 0.0, %v854
  %856 = vmatprep.mubr.f32.mxu0 %v379
  %857 = vmatmul.mubr.f32.gmra.mrb[0].mxu0 %v95
  %v858 = vpop.f32.mrb[0].mxu0
  %v859 = vadd.f32 0.0, %v858
  %v860 = vpop.f32.mrb[0].mxu0
  %v861 = vadd.f32 0.0, %v860
  %862 = vmatprep.mubr.f32.mxu0 %v382
  %863 = vmatmul.mubr.f32.gmra.mrb[0].mxu0 %v97
  %v864 = vpop.f32.mrb[0].mxu0
  %v865 = vadd.f32 0.0, %v864
  %v866 = vpop.f32.mrb[0].mxu0
  %v867 = vadd.f32 0.0, %v866
  %868 = vmatprep.mubr.f32.mxu0 %v385
  %869 = vmatmul.mubr.f32.gmra.mrb[0].mxu0 %v99
  %v870 = vpop.f32.mrb[0].mxu0
  %v871 = vadd.f32 0.0, %v870
  %v872 = vpop.f32.mrb[0].mxu0
  %v873 = vadd.f32 0.0, %v872
  %874 = vmatprep.mubr.f32.mxu0 %v388
  %875 = vmatmul.mubr.f32.gmra.mrb[0].mxu0 %v101
  %v876 = vpop.f32.mrb[0].mxu0
  %v877 = vadd.f32 0.0, %v876
  %v878 = vpop.f32.mrb[0].mxu0
  %v879 = vadd.f32 0.0, %v878
  %880 = vmatprep.mubr.f32.mxu0 %v391
  %881 = vmatmul.mubr.f32.gmra.mrb[0].mxu0 %v103
  %v882 = vpop.f32.mrb[0].mxu0
  %v883 = vadd.f32 0.0, %v882
  %v884 = vpop.f32.mrb[0].mxu0
  %v885 = vadd.f32 0.0, %v884
  %886 = vmatprep.mubr.f32.mxu0 %v394
  %887 = vmatmul.mubr.f32.gmra.mrb[0].mxu0 %v105
  %v888 = vpop.f32.mrb[0].mxu0
  %v889 = vadd.f32 0.0, %v888
  %v890 = vpop.f32.mrb[0].mxu0
  %v891 = vadd.f32 0.0, %v890
  %892 = vmatprep.mubr.f32.mxu0 %v397
  %893 = vmatmul.mubr.f32.gmra.mrb[0].mxu0 %v107
  %v894 = vpop.f32.mrb[0].mxu0
  %v895 = vadd.f32 0.0, %v894
  %v896 = vpop.f32.mrb[0].mxu0
  %v897 = vadd.f32 0.0, %v896
  %898 = vmatprep.mubr.f32.mxu0 %v400
  %899 = vmatmul.mubr.f32.gmra.mrb[0].mxu0 %v109
  %v900 = vpop.f32.mrb[0].mxu0
  %v901 = vadd.f32 0.0, %v900
  %v902 = vpop.f32.mrb[0].mxu0
  %v903 = vadd.f32 0.0, %v902
  %904 = vmatprep.mubr.f32.mxu0 %v403
  %905 = vmatmul.mubr.f32.gmra.mrb[0].mxu0 %v111
  %v906 = vpop.f32.mrb[0].mxu0
  %v907 = vadd.f32 0.0, %v906
  %v908 = vpop.f32.mrb[0].mxu0
  %v909 = vadd.f32 0.0, %v908
  %910 = vmatprep.mubr.f32.mxu0 %v406
  %911 = vmatmul.mubr.f32.gmra.mrb[0].mxu0 %v113
  %v912 = vpop.f32.mrb[0].mxu0
  %v913 = vadd.f32 0.0, %v912
  %v914 = vpop.f32.mrb[0].mxu0
  %v915 = vadd.f32 0.0, %v914
  %916 = vmatprep.mubr.f32.mxu0 %v409
  %917 = vmatmul.mubr.f32.gmra.mrb[0].mxu0 %v115
  %v918 = vpop.f32.mrb[0].mxu0
  %v919 = vadd.f32 0.0, %v918
  %v920 = vpop.f32.mrb[0].mxu0
  %v921 = vadd.f32 0.0, %v920
  %922 = vmatprep.mubr.f32.mxu0 %v412
  %923 = vmatmul.mubr.f32.gmra.mrb[0].mxu0 %v117
  %v924 = vpop.f32.mrb[0].mxu0
  %v925 = vadd.f32 0.0, %v924
  %v926 = vpop.f32.mrb[0].mxu0
  %v927 = vadd.f32 0.0, %v926
  %928 = vmatprep.mubr.f32.mxu0 %v415
  %929 = vmatmul.mubr.f32.gmra.mrb[0].mxu0 %v119
  %v930 = vpop.f32.mrb[0].mxu0
  %v931 = vadd.f32 0.0, %v930
  %v932 = vpop.f32.mrb[0].mxu0
  %v933 = vadd.f32 0.0, %v932
  %934 = vmatprep.mubr.f32.mxu0 %v418
  %935 = vmatmul.mubr.f32.gmra.mrb[0].mxu0 %v121
  %v936 = vpop.f32.mrb[0].mxu0
  %v937 = vadd.f32 0.0, %v936
  %v938 = vpop.f32.mrb[0].mxu0
  %v939 = vadd.f32 0.0, %v938
  %940 = vmatprep.mubr.f32.mxu0 %v421
  %941 = vmatmul.mubr.f32.gmra.mrb[0].mxu0 %v123
  %v942 = vpop.f32.mrb[0].mxu0
  %v943 = vadd.f32 0.0, %v942
  %v944 = vpop.f32.mrb[0].mxu0
  %v945 = vadd.f32 0.0, %v944
  %946 = vmatprep.mubr.f32.mxu0 %v424
  %947 = vmatmul.mubr.f32.gmra.mrb[0].mxu0 %v125
  %v948 = vpop.f32.mrb[0].mxu0
  %v949 = vadd.f32 0.0, %v948
  %v950 = vpop.f32.mrb[0].mxu0
  %v951 = vadd.f32 0.0, %v950
  %952 = vmatprep.mubr.f32.mxu0 %v427
  %953 = vmatmul.mubr.f32.gmra.mrb[0].mxu0 %v127
  %v954 = vpop.f32.mrb[0].mxu0
  %v955 = vadd.f32 0.0, %v954
  %v956 = vpop.f32.mrb[0].mxu0
  %v957 = vadd.f32 0.0, %v956
  %958 = vmatprep.mubr.f32.mxu0 %v430
  %959 = vmatmul.mubr.f32.gmra.mrb[0].mxu0 %v129
  %v960 = vpop.f32.mrb[0].mxu0
  %v961 = vadd.f32 0.0, %v960
  %v962 = vpop.f32.mrb[0].mxu0
  %v963 = vadd.f32 0.0, %v962
  %964 = vmatprep.mubr.f32.mxu0 %v433
  %965 = vmatmul.mubr.f32.gmra.mrb[0].mxu0 %v131
  %v966 = vpop.f32.mrb[0].mxu0
  %v967 = vadd.f32 0.0, %v966
  %v968 = vpop.f32.mrb[0].mxu0
  %v969 = vadd.f32 0.0, %v968
  %970 = vmatprep.mubr.f32.mxu0 %v436
  %971 = vmatmul.mubr.f32.gmra.mrb[0].mxu0 %v133
  %v972 = vpop.f32.mrb[0].mxu0
  %v973 = vadd.f32 0.0, %v972
  %v974 = vpop.f32.mrb[0].mxu0
  %v975 = vadd.f32 0.0, %v974
  %976 = vmatprep.mubr.f32.mxu0 %v439
  %977 = vmatmul.mubr.f32.gmra.mrb[0].mxu0 %v135
  %v978 = vpop.f32.mrb[0].mxu0
  %v979 = vadd.f32 0.0, %v978
  %v980 = vpop.f32.mrb[0].mxu0
  %v981 = vadd.f32 0.0, %v980
  %982 = vmatprep.mubr.f32.mxu0 %v442
  %983 = vmatmul.mubr.f32.gmra.mrb[0].mxu0 %v137
  %v984 = vpop.f32.mrb[0].mxu0
  %v985 = vadd.f32 0.0, %v984
  %v986 = vpop.f32.mrb[0].mxu0
  %v987 = vadd.f32 0.0, %v986
  %988 = vmatprep.mubr.f32.mxu0 %v445
  %989 = vmatmul.mubr.f32.gmra.mrb[0].mxu0 %v139
  %v990 = vpop.f32.mrb[0].mxu0
  %v991 = vadd.f32 0.0, %v990
  %v992 = vpop.f32.mrb[0].mxu0
  %v993 = vadd.f32 0.0, %v992
  %994 = vmatprep.mubr.f32.mxu0 %v448
  %995 = vmatmul.mubr.f32.gmra.mrb[0].mxu0 %v141
  %v996 = vpop.f32.mrb[0].mxu0
  %v997 = vadd.f32 0.0, %v996
  %v998 = vpop.f32.mrb[0].mxu0
  %v999 = vadd.f32 0.0, %v998
  %1000 = vmatprep.mubr.f32.mxu0 %v451
  %1001 = vmatmul.mubr.f32.gmra.mrb[0].mxu0 %v143
  %v1002 = vpop.f32.mrb[0].mxu0
  %v1003 = vadd.f32 0.0, %v1002
  %v1004 = vpop.f32.mrb[0].mxu0
  %v1005 = vadd.f32 0.0, %v1004
  %1006 = vmatprep.mubr.f32.mxu0 %v454
  %1007 = vmatmul.mubr.f32.gmra.mrb[0].mxu0 %v145
  %v1008 = vpop.f32.mrb[0].mxu0
  %v1009 = vadd.f32 0.0, %v1008
  %v1010 = vpop.f32.mrb[0].mxu0
  %v1011 = vadd.f32 0.0, %v1010
  %1012 = vmatprep.mubr.f32.mxu0 %v457
  %1013 = vmatmul.mubr.f32.gmra.mrb[0].mxu0 %v147
  %v1014 = vpop.f32.mrb[0].mxu0
  %v1015 = vadd.f32 0.0, %v1014
  %v1016 = vpop.f32.mrb[0].mxu0
  %v1017 = vadd.f32 0.0, %v1016
  %1018 = vmatprep.mubr.f32.mxu0 %v460
  %1019 = vmatmul.mubr.f32.gmra.mrb[0].mxu0 %v149
  %v1020 = vpop.f32.mrb[0].mxu0
  %v1021 = vadd.f32 0.0, %v1020
  %v1022 = vpop.f32.mrb[0].mxu0
  %v1023 = vadd.f32 0.0, %v1022
  %1024 = vmatprep.mubr.f32.mxu0 %v463
  %1025 = vmatmul.mubr.f32.gmra.mrb[0].mxu0 %v151
  %v1026 = vpop.f32.mrb[0].mxu0
  %v1027 = vadd.f32 0.0, %v1026
  %v1028 = vpop.f32.mrb[0].mxu0
  %v1029 = vadd.f32 0.0, %v1028
  %1030 = vmatprep.mubr.f32.mxu0 %v466
  %1031 = vmatmul.mubr.f32.gmra.mrb[0].mxu0 %v153
  %v1032 = vpop.f32.mrb[0].mxu0
  %v1033 = vadd.f32 0.0, %v1032
  %v1034 = vpop.f32.mrb[0].mxu0
  %v1035 = vadd.f32 0.0, %v1034
  %1036 = vmatprep.mubr.f32.mxu0 %v469
  %1037 = vmatmul.mubr.f32.gmra.mrb[0].mxu0 %v155
  %v1038 = vpop.f32.mrb[0].mxu0
  %v1039 = vadd.f32 0.0, %v1038
  %v1040 = vpop.f32.mrb[0].mxu0
  %v1041 = vadd.f32 0.0, %v1040
  %1042 = vmatprep.mubr.f32.mxu0 %v472
  %1043 = vmatmul.mubr.f32.gmra.mrb[0].mxu0 %v157
  %v1044 = vpop.f32.mrb[0].mxu0
  %v1045 = vadd.f32 0.0, %v1044
  %v1046 = vpop.f32.mrb[0].mxu0
  %v1047 = vadd.f32 0.0, %v1046
  %1048 = vmatprep.mubr.f32.mxu0 %v475
  %1049 = vmatmul.mubr.f32.gmra.mrb[0].mxu0 %v159
  %v1050 = vpop.f32.mrb[0].mxu0
  %v1051 = vadd.f32 0.0, %v1050
  %v1052 = vpop.f32.mrb[0].mxu0
  %v1053 = vadd.f32 0.0, %v1052
  %1054 = vmatprep.mubr.f32.mxu0 %v478
  %1055 = vmatmul.mubr.f32.gmra.mrb[0].mxu0 %v161
  %v1056 = vpop.f32.mrb[0].mxu0
  %v1057 = vadd.f32 0.0, %v1056
  %v1058 = vpop.f32.mrb[0].mxu0
  %v1059 = vadd.f32 0.0, %v1058
  %1060 = vmatprep.mubr.f32.mxu0 %v481
  %1061 = vmatmul.mubr.f32.gmra.mrb[0].mxu0 %v163
  %v1062 = vpop.f32.mrb[0].mxu0
  %v1063 = vadd.f32 0.0, %v1062
  %v1064 = vpop.f32.mrb[0].mxu0
  %v1065 = vadd.f32 0.0, %v1064
  %1066 = vmatprep.mubr.f32.mxu0 %v484
  %1067 = vmatmul.mubr.f32.gmra.mrb[0].mxu0 %v165
  %v1068 = vpop.f32.mrb[0].mxu0
  %v1069 = vadd.f32 0.0, %v1068
  %v1070 = vpop.f32.mrb[0].mxu0
  %v1071 = vadd.f32 0.0, %v1070
  %1072 = vmatprep.mubr.f32.mxu0 %v487
  %1073 = vmatmul.mubr.f32.gmra.mrb[0].mxu0 %v167
  %v1074 = vpop.f32.mrb[0].mxu0
  %v1075 = vadd.f32 0.0, %v1074
  %v1076 = vpop.f32.mrb[0].mxu0
  %v1077 = vadd.f32 0.0, %v1076
  %1078 = vmatprep.mubr.f32.mxu0 %v490
  %1079 = vmatmul.mubr.f32.gmra.mrb[0].mxu0 %v169
  %v1080 = vpop.f32.mrb[0].mxu0
  %v1081 = vadd.f32 0.0, %v1080
  %v1082 = vpop.f32.mrb[0].mxu0
  %v1083 = vadd.f32 0.0, %v1082
  %1084 = vmatprep.mubr.f32.mxu0 %v493
  %1085 = vmatmul.mubr.f32.gmra.mrb[0].mxu0 %v171
  %v1086 = vpop.f32.mrb[0].mxu0
  %v1087 = vadd.f32 0.0, %v1086
  %v1088 = vpop.f32.mrb[0].mxu0
  %v1089 = vadd.f32 0.0, %v1088
  %1090 = vmatprep.mubr.f32.mxu0 %v496
  %1091 = vmatmul.mubr.f32.gmra.mrb[0].mxu0 %v173
  %v1092 = vpop.f32.mrb[0].mxu0
  %v1093 = vadd.f32 0.0, %v1092
  %v1094 = vpop.f32.mrb[0].mxu0
  %v1095 = vadd.f32 0.0, %v1094
  %1096 = vmatprep.mubr.f32.mxu0 %v499
  %1097 = vmatmul.mubr.f32.gmra.mrb[0].mxu0 %v175
  %v1098 = vpop.f32.mrb[0].mxu0
  %v1099 = vadd.f32 0.0, %v1098
  %v1100 = vpop.f32.mrb[0].mxu0
  %v1101 = vadd.f32 0.0, %v1100
  %1102 = vmatprep.mubr.f32.mxu0 %v502
  %1103 = vmatmul.mubr.f32.gmra.mrb[0].mxu0 %v177
  %v1104 = vpop.f32.mrb[0].mxu0
  %v1105 = vadd.f32 0.0, %v1104
  %v1106 = vpop.f32.mrb[0].mxu0
  %v1107 = vadd.f32 0.0, %v1106
  %1108 = vmatprep.mubr.f32.mxu0 %v505
  %1109 = vmatmul.mubr.f32.gmra.mrb[0].mxu0 %v179
  %v1110 = vpop.f32.mrb[0].mxu0
  %v1111 = vadd.f32 0.0, %v1110
  %v1112 = vpop.f32.mrb[0].mxu0
  %v1113 = vadd.f32 0.0, %v1112
  %1114 = vmatprep.mubr.f32.mxu0 %v508
  %1115 = vmatmul.mubr.f32.gmra.mrb[0].mxu0 %v181
  %v1116 = vpop.f32.mrb[0].mxu0
  %v1117 = vadd.f32 0.0, %v1116
  %v1118 = vpop.f32.mrb[0].mxu0
  %v1119 = vadd.f32 0.0, %v1118
  %1120 = vmatprep.mubr.f32.mxu0 %v511
  %1121 = vmatmul.mubr.f32.gmra.mrb[0].mxu0 %v183
  %v1122 = vpop.f32.mrb[0].mxu0
  %v1123 = vadd.f32 0.0, %v1122
  %v1124 = vpop.f32.mrb[0].mxu0
  %v1125 = vadd.f32 0.0, %v1124
  %1126 = vmatprep.mubr.f32.mxu0 %v514
  %1127 = vmatmul.mubr.f32.gmra.mrb[0].mxu0 %v185
  %v1128 = vpop.f32.mrb[0].mxu0
  %v1129 = vadd.f32 0.0, %v1128
  %v1130 = vpop.f32.mrb[0].mxu0
  %v1131 = vadd.f32 0.0, %v1130
  %1132 = vmatprep.mubr.f32.mxu0 %v517
  %1133 = vmatmul.mubr.f32.gmra.mrb[0].mxu0 %v187
  %v1134 = vpop.f32.mrb[0].mxu0
  %v1135 = vadd.f32 0.0, %v1134
  %v1136 = vpop.f32.mrb[0].mxu0
  %v1137 = vadd.f32 0.0, %v1136
  %1138 = vmatprep.mubr.f32.mxu0 %v520
  %1139 = vmatmul.mubr.f32.gmra.mrb[0].mxu0 %v189
  %v1140 = vpop.f32.mrb[0].mxu0
  %v1141 = vadd.f32 0.0, %v1140
  %v1142 = vpop.f32.mrb[0].mxu0
  %v1143 = vadd.f32 0.0, %v1142
  %1144 = vmatprep.mubr.f32.mxu0 %v523
  %1145 = vmatmul.mubr.f32.gmra.mrb[0].mxu0 %v191
  %v1146 = vpop.f32.mrb[0].mxu0
  %v1147 = vadd.f32 0.0, %v1146
  %v1148 = vpop.f32.mrb[0].mxu0
  %v1149 = vadd.f32 0.0, %v1148
  %1150 = vmatprep.mubr.f32.mxu0 %v526
  %1151 = vmatmul.mubr.f32.gmra.mrb[0].mxu0 %v193
  %v1152 = vpop.f32.mrb[0].mxu0
  %v1153 = vadd.f32 0.0, %v1152
  %v1154 = vpop.f32.mrb[0].mxu0
  %v1155 = vadd.f32 0.0, %v1154
  %1156 = vmatprep.mubr.f32.mxu0 %v529
  %1157 = vmatmul.mubr.f32.gmra.mrb[0].mxu0 %v195
  %v1158 = vpop.f32.mrb[0].mxu0
  %v1159 = vadd.f32 0.0, %v1158
  %v1160 = vpop.f32.mrb[0].mxu0
  %v1161 = vadd.f32 0.0, %v1160
  %1162 = vmatprep.mubr.f32.mxu0 %v532
  %1163 = vmatmul.mubr.f32.gmra.mrb[0].mxu0 %v197
  %v1164 = vpop.f32.mrb[0].mxu0
  %v1165 = vadd.f32 0.0, %v1164
  %v1166 = vpop.f32.mrb[0].mxu0
  %v1167 = vadd.f32 0.0, %v1166
  %1168 = vmatprep.mubr.f32.mxu0 %v535
  %1169 = vmatmul.mubr.f32.gmra.mrb[0].mxu0 %v199
  %v1170 = vpop.f32.mrb[0].mxu0
  %v1171 = vadd.f32 0.0, %v1170
  %v1172 = vpop.f32.mrb[0].mxu0
  %v1173 = vadd.f32 0.0, %v1172
  %1174 = vmatprep.mubr.f32.mxu0 %v538
  %1175 = vmatmul.mubr.f32.gmra.mrb[0].mxu0 %v201
  %v1176 = vpop.f32.mrb[0].mxu0
  %v1177 = vadd.f32 0.0, %v1176
  %v1178 = vpop.f32.mrb[0].mxu0
  %v1179 = vadd.f32 0.0, %v1178
  %1180 = vdwg.mxu0
  %1181 = vst [vmem:[%s2] sm:$0xff] %v607
  %vm1182 = vcmask 556032
  %1183 = vst.msk [vmem:[%s2 + $0x8] sm:$0xff] %vm1182, %v609
  %1184 = vst [vmem:[%s2 + $0x10] sm:$0xff] %v613
  %1185 = vst.msk [vmem:[%s2 + $0x18] sm:$0xff] %vm1182, %v615
  %1186 = vst [vmem:[%s2 + $0x20] sm:$0xff] %v619
  %1187 = vst.msk [vmem:[%s2 + $0x28] sm:$0xff] %vm1182, %v621
  %1188 = vst [vmem:[%s2 + $0x30] sm:$0xff] %v625
  %1189 = vst.msk [vmem:[%s2 + $0x38] sm:$0xff] %vm1182, %v627
  %1190 = vst [vmem:[%s2 + $0x40] sm:$0xff] %v631
  %1191 = vst.msk [vmem:[%s2 + $0x48] sm:$0xff] %vm1182, %v633
  %1192 = vst [vmem:[%s2 + $0x50] sm:$0xff] %v637
  %1193 = vst.msk [vmem:[%s2 + $0x58] sm:$0xff] %vm1182, %v639
  %1194 = vst [vmem:[%s2 + $0x60] sm:$0xff] %v643
  %1195 = vst.msk [vmem:[%s2 + $0x68] sm:$0xff] %vm1182, %v645
  %1196 = vst [vmem:[%s2 + $0x70] sm:$0xff] %v649
  %1197 = vst.msk [vmem:[%s2 + $0x78] sm:$0xff] %vm1182, %v651
  %1198 = vst [vmem:[%s2 + $0x80] sm:$0xff] %v655
  %1199 = vst.msk [vmem:[%s2 + $0x88] sm:$0xff] %vm1182, %v657
  %1200 = vst [vmem:[%s2 + $0x90] sm:$0xff] %v661
  %1201 = vst.msk [vmem:[%s2 + $0x98] sm:$0xff] %vm1182, %v663
  %1202 = vst [vmem:[%s2 + $0xa0] sm:$0xff] %v667
  %1203 = vst.msk [vmem:[%s2 + $0xa8] sm:$0xff] %vm1182, %v669
  %1204 = vst [vmem:[%s2 + $0xb0] sm:$0xff] %v673
  %1205 = vst.msk [vmem:[%s2 + $0xb8] sm:$0xff] %vm1182, %v675
  %1206 = vst [vmem:[%s2 + $0xc0] sm:$0xff] %v679
  %1207 = vst.msk [vmem:[%s2 + $0xc8] sm:$0xff] %vm1182, %v681
  %1208 = vst [vmem:[%s2 + $0xd0] sm:$0xff] %v685
  %1209 = vst.msk [vmem:[%s2 + $0xd8] sm:$0xff] %vm1182, %v687
  %1210 = vst [vmem:[%s2 + $0xe0] sm:$0xff] %v691
  %1211 = vst.msk [vmem:[%s2 + $0xe8] sm:$0xff] %vm1182, %v693
  %1212 = vst [vmem:[%s2 + $0xf0] sm:$0xff] %v697
  %1213 = vst.msk [vmem:[%s2 + $0xf8] sm:$0xff] %vm1182, %v699
  %1214 = vst [vmem:[%s2 + $0x100] sm:$0xff] %v703
  %1215 = vst.msk [vmem:[%s2 + $0x108] sm:$0xff] %vm1182, %v705
  %1216 = vst [vmem:[%s2 + $0x110] sm:$0xff] %v709
  %1217 = vst.msk [vmem:[%s2 + $0x118] sm:$0xff] %vm1182, %v711
  %1218 = vst [vmem:[%s2 + $0x120] sm:$0xff] %v715
  %1219 = vst.msk [vmem:[%s2 + $0x128] sm:$0xff] %vm1182, %v717
  %1220 = vst [vmem:[%s2 + $0x130] sm:$0xff] %v721
  %1221 = vst.msk [vmem:[%s2 + $0x138] sm:$0xff] %vm1182, %v723
  %1222 = vst [vmem:[%s2 + $0x140] sm:$0xff] %v727
  %1223 = vst.msk [vmem:[%s2 + $0x148] sm:$0xff] %vm1182, %v729
  %1224 = vst [vmem:[%s2 + $0x150] sm:$0xff] %v733
  %1225 = vst.msk [vmem:[%s2 + $0x158] sm:$0xff] %vm1182, %v735
  %1226 = vst [vmem:[%s2 + $0x160] sm:$0xff] %v739
  %1227 = vst.msk [vmem:[%s2 + $0x168] sm:$0xff] %vm1182, %v741
  %1228 = vst [vmem:[%s2 + $0x170] sm:$0xff] %v745
  %1229 = vst.msk [vmem:[%s2 + $0x178] sm:$0xff] %vm1182, %v747
  %1230 = vst [vmem:[%s2 + $0x180] sm:$0xff] %v751
  %1231 = vst.msk [vmem:[%s2 + $0x188] sm:$0xff] %vm1182, %v753
  %1232 = vst [vmem:[%s2 + $0x190] sm:$0xff] %v757
  %1233 = vst.msk [vmem:[%s2 + $0x198] sm:$0xff] %vm1182, %v759
  %1234 = vst [vmem:[%s2 + $0x1a0] sm:$0xff] %v763
  %1235 = vst.msk [vmem:[%s2 + $0x1a8] sm:$0xff] %vm1182, %v765
  %1236 = vst [vmem:[%s2 + $0x1b0] sm:$0xff] %v769
  %1237 = vst.msk [vmem:[%s2 + $0x1b8] sm:$0xff] %vm1182, %v771
  %1238 = vst [vmem:[%s2 + $0x1c0] sm:$0xff] %v775
  %1239 = vst.msk [vmem:[%s2 + $0x1c8] sm:$0xff] %vm1182, %v777
  %1240 = vst [vmem:[%s2 + $0x1d0] sm:$0xff] %v781
  %1241 = vst.msk [vmem:[%s2 + $0x1d8] sm:$0xff] %vm1182, %v783
  %1242 = vst [vmem:[%s2 + $0x1e0] sm:$0xff] %v787
  %1243 = vst.msk [vmem:[%s2 + $0x1e8] sm:$0xff] %vm1182, %v789
  %1244 = vst [vmem:[%s2 + $0x1f0] sm:$0xff] %v793
  %1245 = vst.msk [vmem:[%s2 + $0x1f8] sm:$0xff] %vm1182, %v795
  %1246 = vst [vmem:[%s2 + $0x200] sm:$0xff] %v799
  %1247 = vst.msk [vmem:[%s2 + $0x208] sm:$0xff] %vm1182, %v801
  %1248 = vst [vmem:[%s2 + $0x210] sm:$0xff] %v805
  %1249 = vst.msk [vmem:[%s2 + $0x218] sm:$0xff] %vm1182, %v807
  %1250 = vst [vmem:[%s2 + $0x220] sm:$0xff] %v811
  %1251 = vst.msk [vmem:[%s2 + $0x228] sm:$0xff] %vm1182, %v813
  %1252 = vst [vmem:[%s2 + $0x230] sm:$0xff] %v817
  %1253 = vst.msk [vmem:[%s2 + $0x238] sm:$0xff] %vm1182, %v819
  %1254 = vst [vmem:[%s2 + $0x240] sm:$0xff] %v823
  %1255 = vst.msk [vmem:[%s2 + $0x248] sm:$0xff] %vm1182, %v825
  %1256 = vst [vmem:[%s2 + $0x250] sm:$0xff] %v829
  %1257 = vst.msk [vmem:[%s2 + $0x258] sm:$0xff] %vm1182, %v831
  %1258 = vst [vmem:[%s2 + $0x260] sm:$0xff] %v835
  %1259 = vst.msk [vmem:[%s2 + $0x268] sm:$0xff] %vm1182, %v837
  %1260 = vst [vmem:[%s2 + $0x270] sm:$0xff] %v841
  %1261 = vst.msk [vmem:[%s2 + $0x278] sm:$0xff] %vm1182, %v843
  %1262 = vst [vmem:[%s2 + $0x280] sm:$0xff] %v847
  %1263 = vst.msk [vmem:[%s2 + $0x288] sm:$0xff] %vm1182, %v849
  %1264 = vst [vmem:[%s2 + $0x290] sm:$0xff] %v853
  %1265 = vst.msk [vmem:[%s2 + $0x298] sm:$0xff] %vm1182, %v855
  %1266 = vst [vmem:[%s2 + $0x2a0] sm:$0xff] %v859
  %1267 = vst.msk [vmem:[%s2 + $0x2a8] sm:$0xff] %vm1182, %v861
  %1268 = vst [vmem:[%s2 + $0x2b0] sm:$0xff] %v865
  %1269 = vst.msk [vmem:[%s2 + $0x2b8] sm:$0xff] %vm1182, %v867
  %1270 = vst [vmem:[%s2 + $0x2c0] sm:$0xff] %v871
  %1271 = vst.msk [vmem:[%s2 + $0x2c8] sm:$0xff] %vm1182, %v873
  %1272 = vst [vmem:[%s2 + $0x2d0] sm:$0xff] %v877
  %1273 = vst.msk [vmem:[%s2 + $0x2d8] sm:$0xff] %vm1182, %v879
  %1274 = vst [vmem:[%s2 + $0x2e0] sm:$0xff] %v883
  %1275 = vst.msk [vmem:[%s2 + $0x2e8] sm:$0xff] %vm1182, %v885
  %1276 = vst [vmem:[%s2 + $0x2f0] sm:$0xff] %v889
  %1277 = vst.msk [vmem:[%s2 + $0x2f8] sm:$0xff] %vm1182, %v891
  %1278 = vst [vmem:[%s2 + $0x300] sm:$0xff] %v895
  %1279 = vst.msk [vmem:[%s2 + $0x308] sm:$0xff] %vm1182, %v897
  %1280 = vst [vmem:[%s2 + $0x310] sm:$0xff] %v901
  %1281 = vst.msk [vmem:[%s2 + $0x318] sm:$0xff] %vm1182, %v903
  %1282 = vst [vmem:[%s2 + $0x320] sm:$0xff] %v907
  %1283 = vst.msk [vmem:[%s2 + $0x328] sm:$0xff] %vm1182, %v909
  %1284 = vst [vmem:[%s2 + $0x330] sm:$0xff] %v913
  %1285 = vst.msk [vmem:[%s2 + $0x338] sm:$0xff] %vm1182, %v915
  %1286 = vst [vmem:[%s2 + $0x340] sm:$0xff] %v919
  %1287 = vst.msk [vmem:[%s2 + $0x348] sm:$0xff] %vm1182, %v921
  %1288 = vst [vmem:[%s2 + $0x350] sm:$0xff] %v925
  %1289 = vst.msk [vmem:[%s2 + $0x358] sm:$0xff] %vm1182, %v927
  %1290 = vst [vmem:[%s2 + $0x360] sm:$0xff] %v931
  %1291 = vst.msk [vmem:[%s2 + $0x368] sm:$0xff] %vm1182, %v933
  %1292 = vst [vmem:[%s2 + $0x370] sm:$0xff] %v937
  %1293 = vst.msk [vmem:[%s2 + $0x378] sm:$0xff] %vm1182, %v939
  %1294 = vst [vmem:[%s2 + $0x380] sm:$0xff] %v943
  %1295 = vst.msk [vmem:[%s2 + $0x388] sm:$0xff] %vm1182, %v945
  %1296 = vst [vmem:[%s2 + $0x390] sm:$0xff] %v949
  %1297 = vst.msk [vmem:[%s2 + $0x398] sm:$0xff] %vm1182, %v951
  %1298 = vst [vmem:[%s2 + $0x3a0] sm:$0xff] %v955
  %1299 = vst.msk [vmem:[%s2 + $0x3a8] sm:$0xff] %vm1182, %v957
  %1300 = vst [vmem:[%s2 + $0x3b0] sm:$0xff] %v961
  %1301 = vst.msk [vmem:[%s2 + $0x3b8] sm:$0xff] %vm1182, %v963
  %1302 = vst [vmem:[%s2 + $0x3c0] sm:$0xff] %v967
  %1303 = vst.msk [vmem:[%s2 + $0x3c8] sm:$0xff] %vm1182, %v969
  %1304 = vst [vmem:[%s2 + $0x3d0] sm:$0xff] %v973
  %1305 = vst.msk [vmem:[%s2 + $0x3d8] sm:$0xff] %vm1182, %v975
  %1306 = vst [vmem:[%s2 + $0x3e0] sm:$0xff] %v979
  %1307 = vst.msk [vmem:[%s2 + $0x3e8] sm:$0xff] %vm1182, %v981
  %1308 = vst [vmem:[%s2 + $0x3f0] sm:$0xff] %v985
  %1309 = vst.msk [vmem:[%s2 + $0x3f8] sm:$0xff] %vm1182, %v987
  %1310 = vst [vmem:[%s2 + $0x400] sm:$0xff] %v991
  %1311 = vst.msk [vmem:[%s2 + $0x408] sm:$0xff] %vm1182, %v993
  %1312 = vst [vmem:[%s2 + $0x410] sm:$0xff] %v997
  %1313 = vst.msk [vmem:[%s2 + $0x418] sm:$0xff] %vm1182, %v999
  %1314 = vst [vmem:[%s2 + $0x420] sm:$0xff] %v1003
  %1315 = vst.msk [vmem:[%s2 + $0x428] sm:$0xff] %vm1182, %v1005
  %1316 = vst [vmem:[%s2 + $0x430] sm:$0xff] %v1009
  %1317 = vst.msk [vmem:[%s2 + $0x438] sm:$0xff] %vm1182, %v1011
  %1318 = vst [vmem:[%s2 + $0x440] sm:$0xff] %v1015
  %1319 = vst.msk [vmem:[%s2 + $0x448] sm:$0xff] %vm1182, %v1017
  %1320 = vst [vmem:[%s2 + $0x450] sm:$0xff] %v1021
  %1321 = vst.msk [vmem:[%s2 + $0x458] sm:$0xff] %vm1182, %v1023
  %1322 = vst [vmem:[%s2 + $0x460] sm:$0xff] %v1027
  %1323 = vst.msk [vmem:[%s2 + $0x468] sm:$0xff] %vm1182, %v1029
  %1324 = vst [vmem:[%s2 + $0x470] sm:$0xff] %v1033
  %1325 = vst.msk [vmem:[%s2 + $0x478] sm:$0xff] %vm1182, %v1035
  %1326 = vst [vmem:[%s2 + $0x480] sm:$0xff] %v1039
  %1327 = vst.msk [vmem:[%s2 + $0x488] sm:$0xff] %vm1182, %v1041
  %1328 = vst [vmem:[%s2 + $0x490] sm:$0xff] %v1045
  %1329 = vst.msk [vmem:[%s2 + $0x498] sm:$0xff] %vm1182, %v1047
  %1330 = vst [vmem:[%s2 + $0x4a0] sm:$0xff] %v1051
  %1331 = vst.msk [vmem:[%s2 + $0x4a8] sm:$0xff] %vm1182, %v1053
  %1332 = vst [vmem:[%s2 + $0x4b0] sm:$0xff] %v1057
  %1333 = vst.msk [vmem:[%s2 + $0x4b8] sm:$0xff] %vm1182, %v1059
  %1334 = vst [vmem:[%s2 + $0x4c0] sm:$0xff] %v1063
  %1335 = vst.msk [vmem:[%s2 + $0x4c8] sm:$0xff] %vm1182, %v1065
  %1336 = vst [vmem:[%s2 + $0x4d0] sm:$0xff] %v1069
  %1337 = vst.msk [vmem:[%s2 + $0x4d8] sm:$0xff] %vm1182, %v1071
  %1338 = vst [vmem:[%s2 + $0x4e0] sm:$0xff] %v1075
  %1339 = vst.msk [vmem:[%s2 + $0x4e8] sm:$0xff] %vm1182, %v1077
  %1340 = vst [vmem:[%s2 + $0x4f0] sm:$0xff] %v1081
  %1341 = vst.msk [vmem:[%s2 + $0x4f8] sm:$0xff] %vm1182, %v1083
  %1342 = vst [vmem:[%s2 + $0x500] sm:$0xff] %v1087
  %1343 = vst.msk [vmem:[%s2 + $0x508] sm:$0xff] %vm1182, %v1089
  %1344 = vst [vmem:[%s2 + $0x510] sm:$0xff] %v1093
  %1345 = vst.msk [vmem:[%s2 + $0x518] sm:$0xff] %vm1182, %v1095
  %1346 = vst [vmem:[%s2 + $0x520] sm:$0xff] %v1099
  %1347 = vst.msk [vmem:[%s2 + $0x528] sm:$0xff] %vm1182, %v1101
  %1348 = vst [vmem:[%s2 + $0x530] sm:$0xff] %v1105
  %1349 = vst.msk [vmem:[%s2 + $0x538] sm:$0xff] %vm1182, %v1107
  %1350 = vst [vmem:[%s2 + $0x540] sm:$0xff] %v1111
  %1351 = vst.msk [vmem:[%s2 + $0x548] sm:$0xff] %vm1182, %v1113
  %1352 = vst [vmem:[%s2 + $0x550] sm:$0xff] %v1117
  %1353 = vst.msk [vmem:[%s2 + $0x558] sm:$0xff] %vm1182, %v1119
  %1354 = vst [vmem:[%s2 + $0x560] sm:$0xff] %v1123
  %1355 = vst.msk [vmem:[%s2 + $0x568] sm:$0xff] %vm1182, %v1125
  %1356 = vst [vmem:[%s2 + $0x570] sm:$0xff] %v1129
  %1357 = vst.msk [vmem:[%s2 + $0x578] sm:$0xff] %vm1182, %v1131
  %1358 = vst [vmem:[%s2 + $0x580] sm:$0xff] %v1135
  %1359 = vst.msk [vmem:[%s2 + $0x588] sm:$0xff] %vm1182, %v1137
  %1360 = vst [vmem:[%s2 + $0x590] sm:$0xff] %v1141
  %1361 = vst.msk [vmem:[%s2 + $0x598] sm:$0xff] %vm1182, %v1143
  %1362 = vst [vmem:[%s2 + $0x5a0] sm:$0xff] %v1147
  %1363 = vst.msk [vmem:[%s2 + $0x5a8] sm:$0xff] %vm1182, %v1149
  %1364 = vst [vmem:[%s2 + $0x5b0] sm:$0xff] %v1153
  %1365 = vst.msk [vmem:[%s2 + $0x5b8] sm:$0xff] %vm1182, %v1155
  %1366 = vst [vmem:[%s2 + $0x5c0] sm:$0xff] %v1159
  %1367 = vst.msk [vmem:[%s2 + $0x5c8] sm:$0xff] %vm1182, %v1161
  %1368 = vst [vmem:[%s2 + $0x5d0] sm:$0xff] %v1165
  %1369 = vst.msk [vmem:[%s2 + $0x5d8] sm:$0xff] %vm1182, %v1167
  %1370 = vst [vmem:[%s2 + $0x5e0] sm:$0xff] %v1171
  %1371 = vst.msk [vmem:[%s2 + $0x5e8] sm:$0xff] %vm1182, %v1173
  %1372 = vst [vmem:[%s2 + $0x5f0] sm:$0xff] %v1177
  %1373 = vst.msk [vmem:[%s2 + $0x5f8] sm:$0xff] %vm1182, %v1179
  // Predicated region
  $region10: #{tpu_custom_call.1} parent=0 // pred_check
    _
  $region11: #{tpu_custom_call.1} parent=0 // pred_check_branch
    %1375 = sbr.rel (0) target = $region13
  $region12: #{tpu_custom_call.1} parent=0 // pred_region
    _
  $region13: #{tpu_custom_call.1} parent=0 // pred_fallthru
    _
  // Predicated region
  $region14: #{tpu_custom_call.1} parent=0 // pred_check
    _
  $region15: #{tpu_custom_call.1} parent=0 // pred_check_branch
    %1377 = sbr.rel (0) target = $region17
  $region16: #{tpu_custom_call.1} parent=0 // pred_region
    _
  $region17: #{tpu_custom_call.1} parent=0 // pred_fallthru
    _

</llo_original>
